<compile_context>
chip_gen: v7x
topology: tpu7x:2x2x1
jax: 0.10.0
libtpu: 0.0.40
codegen_flags: <defaults>
</compile_context>

<pallas_src>
import functools

import jax
import jax.numpy as jnp
from jax.experimental import pallas as pl
from jax.experimental.pallas import tpu as pltpu

_MIB = 1024 * 1024


def _round_up(x, m):
    return ((x + m - 1) // m) * m


def _sublane_min(dtype):
    # dtype min-tile sublane count: f32 -> 8, bf16/f16 -> 16, int8/fp8 -> 32.
    return max(8, 32 // jnp.dtype(dtype).itemsize)


def _is_multi_tensorcore():
    # v7x exposes 2 TensorCores per JAX device; v5e/v6e have 1.
    try:
        kind = jax.local_devices()[0].device_kind.lower()
    except Exception:
        return False
    return ("v7" in kind) or ("7x" in kind)


def _modulator(diff_abs, gamma):
    """Trace-time specialization of |p - y| ** gamma (avoid pow on the EUP)."""
    if gamma == 1.0:
        return diff_abs
    if gamma == 2.0:
        return diff_abs * diff_abs
    return jnp.power(diff_abs, gamma)


def _varifocal_elem(x, y, *, weight, alpha, gamma, iou_weighted):
    """Per-element varifocal loss in f32. x = logits, y = labels.

    Shares a single exp(-|x|) between the sigmoid and the numerically stable
    BCE-with-logits so the EUP runs 2 transcendentals/element (exp + log1p).
    """
    w = 1.0 if weight is None else float(weight)
    e = jnp.exp(-jnp.abs(x))                         # shared exponential
    p = jnp.where(x >= 0.0, 1.0, e) / (1.0 + e)      # == sigmoid(x)
    # NOTE: if the VALU ever binds (v7x sum path), the divide above can move
    # to the EUP via pl.reciprocal(1.0 + e, approx=True) at tiny accuracy cost.
    mod = (w * alpha) * _modulator(jnp.abs(p - y), gamma)
    pos_term = (w * y) if iou_weighted else jnp.float32(w)
    fw = jnp.where(y > 0.0, pos_term, mod)
    bce = jnp.maximum(x, 0.0) - x * y + jnp.log1p(e)  # stable BCE (none-reduced)
    return bce * fw


# ---------------------------------------------------------------------------
# Kernel 1: elementwise loss only (reduction='none')
#   Ragged tail rows compute garbage that Pallas drops on the output copy-back.
# ---------------------------------------------------------------------------
def _vfl_none_kernel(logits_ref, labels_ref, out_ref, *,
                     weight, alpha, gamma, iou_weighted):
    x = logits_ref[...].astype(jnp.float32)
    y = labels_ref[...].astype(jnp.float32)
    loss = _varifocal_elem(x, y, weight=weight, alpha=alpha,
                           gamma=gamma, iou_weighted=iou_weighted)
    out_ref[...] = loss.astype(out_ref.dtype)


# ---------------------------------------------------------------------------
# Kernel 2: fused loss + partial-sum reduction (reduction='sum' / 'mean')
#   grid = (num_partials, tiles_per_partial [arbitrary / reduction])
#   per-step: row-fold into an (8, C) VMEM accumulator (pure vreg adds)
#   epilogue: single cross-lane reduce -> SMEM scalar per partial
# ---------------------------------------------------------------------------
def _vfl_sum_kernel(logits_ref, labels_ref, out_ref, acc_ref, *,
                    weight, alpha, gamma, iou_weighted,
                    tile_n, tiles_per_partial, n_rows, needs_mask):
    t = pl.program_id(1)

    @pl.when(t == 0)
    def _():
        acc_ref[...] = jnp.zeros_like(acc_ref)

    x = logits_ref[...].astype(jnp.float32)
    y = labels_ref[...].astype(jnp.float32)
    loss = _varifocal_elem(x, y, weight=weight, alpha=alpha, gamma=gamma,
                           iou_weighted=iou_weighted)

    if needs_mask:
        # Ragged tail / duplicated (clamped) blocks: zero rows whose *logical*
        # global row index is >= n_rows so garbage never reaches the sum.
        blk = pl.program_id(0) * tiles_per_partial + t
        row = jax.lax.broadcasted_iota(jnp.int32, loss.shape, 0) + blk * tile_n
        loss = jnp.where(row < n_rows, loss, 0.0)

    lanes = loss.shape[-1]
    # Fold rows into the (8, lanes) accumulator: pure vreg adds, no XLU work.
    acc_ref[...] += loss.reshape(tile_n // 8, 8, lanes).sum(axis=0)

    @pl.when(t == pl.num_programs(1) - 1)
    def _():
        out_ref[0, 0] = jnp.sum(acc_ref[...])   # one cross-lane reduce / partial


def _call_with_semantics_fallback(build, options):
    err = None
    for opt in options:
        try:
            return build(opt)
        except Exception as e:  # only hit if CORE_PARALLEL is rejected on HW
            err = e
    raise err


def varifocal_loss_pallas(logits, labels, weight=None, alpha=0.75, gamma=2.0,
                          iou_weighted=True, reduction="none", *,
                          target_block_bytes=None, num_partials=None):
    """Pallas varifocal loss. logits/labels: (N, C). weight: scalar or None."""
    # TODO(synk): per-prediction tensor `weight` is not supported; the module
    # forward only ever passes a Python scalar (self.alpha).
    assert logits.shape == labels.shape and logits.ndim == 2
    assert reduction in ("none", "sum", "mean")
    N, C = logits.shape
    n_elem = N * C
    in_bytes = jnp.dtype(logits.dtype).itemsize

    multi_tc = _is_multi_tensorcore()
    if num_partials is None:
        num_partials = 2 if multi_tc else 1
    if target_block_bytes is None:
        # 2 MiB blocks already reach ~85% of HBM roofline on v5e/v6e; v7x's
        # ~3.2 TB/s HBM wants bigger blocks to amortize per-step overhead.
        target_block_bytes = (4 if multi_tc else 2) * _MIB

    # --- tiling over rows of the natural (N, C) layout: zero-copy -----------
    sublane_min = max(_sublane_min(logits.dtype), _sublane_min(labels.dtype))
    padded_c = _round_up(C, 128)              # VMEM lane padding
    tile_n = (target_block_bytes // (padded_c * 4)) // sublane_min * sublane_min
    tile_n = max(sublane_min, min(tile_n, _round_up(N, sublane_min)))
    # TODO(synk): if C alone is so large that an (sublane_min, C) block cannot
    # fit in VMEM, the class dimension would also need to be tiled.

    n_blocks = pl.cdiv(N, tile_n)
    num_partials = max(1, min(num_partials, n_blocks))
    tiles_per_partial = pl.cdiv(n_blocks, num_partials)
    needs_clamp = num_partials * tiles_per_partial > n_blocks

    def row_map(p, t):
        blk = p * tiles_per_partial + t
        if needs_clamp:
            blk = jnp.minimum(blk, n_blocks - 1)   # never issue a fully-OOB DMA
        return (blk, 0)

    in_spec = pl.BlockSpec((tile_n, C), row_map)
    vmem_limit = int(min(96 * _MIB, max(32 * _MIB, 12 * target_block_bytes)))

    def dim_semantics_options():
        if num_partials > 1 and multi_tc:
            # Guarantee the partials axis is split across v7x's 2 TensorCores;
            # fall back to plain megacore "parallel" if CORE_PARALLEL is
            # rejected by this chip/compiler.
            return [(pltpu.CORE_PARALLEL, pltpu.ARBITRARY),
                    (pltpu.PARALLEL, pltpu.ARBITRARY)]
        if num_partials > 1:
            return [(pltpu.PARALLEL, pltpu.ARBITRARY)]
        return [(pltpu.ARBITRARY, pltpu.ARBITRARY)]

    kern_kwargs = dict(weight=weight, alpha=alpha, gamma=gamma,
                       iou_weighted=iou_weighted)

    if reduction in ("sum", "mean"):
        needs_mask = (N % tile_n != 0) or needs_clamp
        cost = pl.CostEstimate(
            flops=16 * n_elem,
            transcendentals=2 * n_elem,
            bytes_accessed=2 * n_elem * in_bytes + 4 * num_partials)

        def build(dim_sem):
            return pl.pallas_call(
                functools.partial(
                    _vfl_sum_kernel, tile_n=tile_n,
                    tiles_per_partial=tiles_per_partial, n_rows=N,
                    needs_mask=needs_mask, **kern_kwargs),
                out_shape=jax.ShapeDtypeStruct((num_partials, 1), jnp.float32),
                grid_spec=pltpu.PrefetchScalarGridSpec(
                    num_scalar_prefetch=0,
                    grid=(num_partials, tiles_per_partial),
                    in_specs=[in_spec, in_spec],
                    out_specs=pl.BlockSpec((1, 1), lambda p, t: (p, 0),
                                           memory_space=pltpu.SMEM),
                    scratch_shapes=[pltpu.VMEM((8, C), jnp.float32)],
                ),
                compiler_params=pltpu.CompilerParams(
                    dimension_semantics=dim_sem,
                    vmem_limit_bytes=vmem_limit),
                cost_estimate=cost,
            )(logits, labels)

        partials = _call_with_semantics_fallback(build, dim_semantics_options())
        total_loss = jnp.sum(partials)
        if reduction == "mean":
            return total_loss / jnp.float32(n_elem)
        return total_loss

    # reduction == 'none' -- output in the input dtype (less HBM traffic).
    out_dtype = (logits.dtype if jnp.issubdtype(logits.dtype, jnp.floating)
                 else jnp.float32)
    out_bytes = jnp.dtype(out_dtype).itemsize
    cost = pl.CostEstimate(
        flops=16 * n_elem,
        transcendentals=2 * n_elem,
        bytes_accessed=2 * n_elem * in_bytes + n_elem * out_bytes)

    def build(dim_sem):
        return pl.pallas_call(
            functools.partial(_vfl_none_kernel, **kern_kwargs),
            out_shape=jax.ShapeDtypeStruct((N, C), out_dtype),
            grid_spec=pltpu.PrefetchScalarGridSpec(
                num_scalar_prefetch=0,
                grid=(num_partials, tiles_per_partial),
                in_specs=[in_spec, in_spec],
                out_specs=pl.BlockSpec((tile_n, C), row_map),
            ),
            compiler_params=pltpu.CompilerParams(
                dimension_semantics=dim_sem,
                vmem_limit_bytes=vmem_limit),
            cost_estimate=cost,
        )(logits, labels)

    return _call_with_semantics_fallback(build, dim_semantics_options())


class VariFocalLoss:
    """JAX/Pallas port of the PyTorch VariFocalLoss module (no parameters)."""

    def __init__(self, alpha: float = 0.75, gamma: float = 2.0,
                 iou_weighted: bool = True, reduction: str = "mean"):
        assert reduction in ("mean", "sum", "none")
        assert alpha >= 0.0
        self.alpha = alpha
        self.gamma = gamma
        self.iou_weighted = iou_weighted
        self.reduction = reduction

    def __call__(self, logits, labels):
        # Reproduce the original forward's positional-argument shift exactly:
        # weight=self.alpha, alpha=self.gamma, gamma=float(self.iou_weighted),
        # iou_weighted=default True.
        return varifocal_loss_pallas(
            logits, labels,
            weight=self.alpha,
            alpha=self.gamma,
            gamma=float(self.iou_weighted),
            iou_weighted=True,
            reduction=self.reduction,
        )


if __name__ == "__main__":
    key = jax.random.PRNGKey(0)

    def make_inputs(k, N, C):
        k1, k2, k3 = jax.random.split(k, 3)
        logits = jax.random.normal(k1, (N, C), dtype=jnp.float32) * 2.0
        raw = jax.random.uniform(k2, (N, C), dtype=jnp.float32)
        pos_mask = jax.random.uniform(k3, (N, C)) < 0.1
        labels = jnp.where(pos_mask, raw, 0.0).astype(jnp.float32)
        return logits, labels

    # pure-JAX reference with the exact (arg-shifted) PyTorch formula
    def ref_loss(x, y, weight, alpha, gamma, iou_weighted):
        p = jax.nn.sigmoid(x)
        pos = (y > 0.0).astype(jnp.float32)
        neg = (y <= 0.0).astype(jnp.float32)
        base = y * pos if iou_weighted else pos
        fw = base + alpha * jnp.abs(p - y) ** gamma * neg
        bce = jnp.maximum(x, 0.0) - x * y + jnp.log1p(jnp.exp(-jnp.abs(x)))
        loss = bce * fw
        return loss * weight if weight is not None else loss

    # One shape that tiles exactly and one ragged shape that exercises the
    # in-kernel tail masking / OOB-write-drop paths.
    for (N, C) in [(64, 32), (50, 20)]:
        logits, labels = make_inputs(jax.random.fold_in(key, N * 1000 + C), N, C)
        ref_elem = ref_loss(logits, labels, weight=0.75, alpha=2.0, gamma=1.0,
                            iou_weighted=True)

        out_mean = jax.block_until_ready(
            VariFocalLoss(reduction="mean")(logits, labels))
        assert jnp.allclose(out_mean, jnp.mean(ref_elem), rtol=1e-5, atol=1e-6), \
            ("mean", N, C, out_mean, jnp.mean(ref_elem))

        out_sum = jax.block_until_ready(
            VariFocalLoss(reduction="sum")(logits, labels))
        assert jnp.allclose(out_sum, jnp.sum(ref_elem), rtol=1e-5, atol=1e-4), \
            ("sum", N, C, out_sum, jnp.sum(ref_elem))

        out_none = jax.block_until_ready(
            VariFocalLoss(reduction="none")(logits, labels))
        assert out_none.shape == (N, C)
        assert jnp.allclose(out_none, ref_elem, rtol=1e-5, atol=1e-6), \
            ("none", N, C)

    print("KERNEL_OK")
</pallas_src>

<mosaic_0001>
module attributes {stable_mosaic.version = 11 : i64} {
  func.func @_vfl_sum_kernel(%arg0: i32, %arg1: i32, %arg2: memref<64x32xf32, #tpu.memory_space<vmem>>, %arg3: memref<64x32xf32, #tpu.memory_space<vmem>>, %arg4: memref<1x1xf32, #tpu.memory_space<smem>>, %arg5: memref<8x32xf32, #tpu.memory_space<vmem>>) attributes {dimension_semantics = [#tpu.dimension_semantics<arbitrary>, #tpu.dimension_semantics<arbitrary>], iteration_bounds = array<i64: 1, 1>, scalar_prefetch = 0 : i64, scratch_operands = 1 : i64, tpu.core_type = #tpu.core_type<tc>, window_params = [{transform_indices = @transform_0, window_bounds = array<i64: 64, 32>}, {transform_indices = @transform_1, window_bounds = array<i64: 64, 32>}, {transform_indices = @transform_2, window_bounds = array<i64: 1, 1>}]} {
    %c0_i32 = arith.constant 0 : i32
    %0 = arith.cmpi eq, %arg1, %c0_i32 : i32
    %1 = arith.extui %0 : i1 to i32
    %c0_i32_0 = arith.constant 0 : i32
    %2 = arith.cmpi ne, %1, %c0_i32_0 : i32
    scf.if %2 {
      %cst_18 = arith.constant 0.000000e+00 : f32
      %40 = vector.broadcast %cst_18 : f32 to vector<8x32xf32>
      %c0_19 = arith.constant 0 : index
      %c0_20 = arith.constant 0 : index
      %41 = vector.load %arg5[%c0_19, %c0_20] : memref<8x32xf32, #tpu.memory_space<vmem>>, vector<8x32xf32>
      tpu.vector_store %arg5[%c0_19, %c0_20], %40 {strides = array<i32>} : memref<8x32xf32, #tpu.memory_space<vmem>>, vector<8x32xf32>,
    } else {
    }
    %c0 = arith.constant 0 : index
    %c0_1 = arith.constant 0 : index
    %3 = vector.load %arg2[%c0, %c0_1] : memref<64x32xf32, #tpu.memory_space<vmem>>, vector<64x32xf32>
    %c0_2 = arith.constant 0 : index
    %c0_3 = arith.constant 0 : index
    %4 = vector.load %arg3[%c0_2, %c0_3] : memref<64x32xf32, #tpu.memory_space<vmem>>, vector<64x32xf32>
    %5 = math.absf %3 : vector<64x32xf32>
    %cst = arith.constant 0.000000e+00 : f32
    %6 = vector.broadcast %cst : f32 to vector<64x32xf32>
    %7 = arith.subf %6, %5 : vector<64x32xf32>
    %8 = math.exp %7 : vector<64x32xf32>
    %cst_4 = arith.constant 0.000000e+00 : f32
    %9 = vector.broadcast %cst_4 : f32 to vector<64x32xf32>
    %10 = arith.cmpf oge, %3, %9 : vector<64x32xf32>
    %cst_5 = arith.constant 1.000000e+00 : f32
    %11 = vector.broadcast %cst_5 : f32 to vector<64x32xf32>
    %12 = arith.select %10, %11, %8 : vector<64x32xi1>, vector<64x32xf32>
    %cst_6 = arith.constant 1.000000e+00 : f32
    %13 = vector.broadcast %cst_6 : f32 to vector<64x32xf32>
    %14 = arith.addf %13, %8 : vector<64x32xf32>
    %15 = arith.divf %12, %14 : vector<64x32xf32>
    %16 = arith.subf %15, %4 : vector<64x32xf32>
    %17 = math.absf %16 : vector<64x32xf32>
    %cst_7 = arith.constant 1.500000e+00 : f32
    %18 = vector.broadcast %cst_7 : f32 to vector<64x32xf32>
    %19 = arith.mulf %18, %17 : vector<64x32xf32>
    %cst_8 = arith.constant 7.500000e-01 : f32
    %20 = vector.broadcast %cst_8 : f32 to vector<64x32xf32>
    %21 = arith.mulf %20, %4 : vector<64x32xf32>
    %cst_9 = arith.constant 0.000000e+00 : f32
    %22 = vector.broadcast %cst_9 : f32 to vector<64x32xf32>
    %23 = arith.cmpf ogt, %4, %22 : vector<64x32xf32>
    %24 = arith.select %23, %21, %19 : vector<64x32xi1>, vector<64x32xf32>
    %cst_10 = arith.constant 0.000000e+00 : f32
    %25 = vector.broadcast %cst_10 : f32 to vector<64x32xf32>
    %26 = arith.maximumf %3, %25 : vector<64x32xf32>
    %27 = arith.mulf %3, %4 : vector<64x32xf32>
    %28 = arith.subf %26, %27 : vector<64x32xf32>
    %29 = math.log1p %8 : vector<64x32xf32>
    %30 = arith.addf %28, %29 : vector<64x32xf32>
    %31 = arith.mulf %30, %24 : vector<64x32xf32>
    %c0_11 = arith.constant 0 : index
    %c0_12 = arith.constant 0 : index
    %32 = vector.load %arg5[%c0_11, %c0_12] : memref<8x32xf32, #tpu.memory_space<vmem>>, vector<8x32xf32>
    %33 = vector.shape_cast %31 : vector<64x32xf32> to vector<8x8x32xf32>
    %cst_13 = arith.constant dense<0.000000e+00> : vector<8x32xf32>
    %34 = vector.multi_reduction <add>, %33, %cst_13 [0] : vector<8x8x32xf32> to vector<8x32xf32>
    %35 = arith.addf %32, %34 : vector<8x32xf32>
    %c0_14 = arith.constant 0 : index
    %c0_15 = arith.constant 0 : index
    %36 = vector.load %arg5[%c0_14, %c0_15] : memref<8x32xf32, #tpu.memory_space<vmem>>, vector<8x32xf32>
    tpu.vector_store %arg5[%c0_14, %c0_15], %35 {strides = array<i32>} : memref<8x32xf32, #tpu.memory_space<vmem>>, vector<8x32xf32>,
    %c0_i32_16 = arith.constant 0 : i32
    %37 = arith.cmpi eq, %arg1, %c0_i32_16 : i32
    %38 = arith.extui %37 : i1 to i32
    %c0_i32_17 = arith.constant 0 : i32
    %39 = arith.cmpi ne, %38, %c0_i32_17 : i32
    scf.if %39 {
      %c0_18 = arith.constant 0 : index
      %c0_19 = arith.constant 0 : index
      %40 = vector.load %arg5[%c0_18, %c0_19] : memref<8x32xf32, #tpu.memory_space<vmem>>, vector<8x32xf32>
      %41 = vector.shape_cast %40 : vector<8x32xf32> to vector<1x8x32xf32>
      %cst_20 = arith.constant dense<0.000000e+00> : vector<1xf32>
      %42 = vector.multi_reduction <add>, %41, %cst_20 [1, 2] : vector<1x8x32xf32> to vector<1xf32>
      %43 = vector.shape_cast %42 : vector<1xf32> to vector<1x1x1xf32>
      %44 = vector.extract %43[0, 0, 0] : f32 from vector<1x1x1xf32>
      %c0_21 = arith.constant 0 : index
      %c0_22 = arith.constant 0 : index
      %45 = memref.load %arg4[%c0_21, %c0_22] : memref<1x1xf32, #tpu.memory_space<smem>>
      memref.store %44, %arg4[%c0_21, %c0_22] : memref<1x1xf32, #tpu.memory_space<smem>>
    } else {
    }
    return
  }
  func.func @transform_0(%arg0: i32, %arg1: i32) -> (i32, i32) {
    %c1_i32 = arith.constant 1 : i32
    %0 = arith.muli %arg0, %c1_i32 : i32
    %1 = arith.addi %0, %arg1 : i32
    %c0_i32 = arith.constant 0 : i32
    %c0_i32_0 = arith.constant 0 : i32
    return %1, %c0_i32 : i32, i32
  }
  func.func @transform_1(%arg0: i32, %arg1: i32) -> (i32, i32) {
    %c1_i32 = arith.constant 1 : i32
    %0 = arith.muli %arg0, %c1_i32 : i32
    %1 = arith.addi %0, %arg1 : i32
    %c0_i32 = arith.constant 0 : i32
    %c0_i32_0 = arith.constant 0 : i32
    return %1, %c0_i32 : i32, i32
  }
  func.func @transform_2(%arg0: i32, %arg1: i32) -> (i32, i32) {
    %c0_i32 = arith.constant 0 : i32
    %c0_i32_0 = arith.constant 0 : i32
    return %arg0, %c0_i32 : i32, i32
  }
}

</mosaic_0001>

<llo_original>
// kernel: tpu_custom_call.1
$region0: #{tpu_custom_call.1}
  #allocation0 [shape = 'u32[]', space=smem, size = 0x4, offset = 0x4, fixed_abs, tag = 'smem constant byte address 0x4 - core index']
  #allocation1 [shape = 'u32[144,128]{1,0:T(1,128)}', space=vmem, size = 0x12000, scoped, tag = 'internal scratch']
  #allocation2 [shape = 'f32[8,32]{1,0:T(8,128)}', space=vmem, size = 0x1000, scoped, tag = 'scratch operand']
  %s0 = inlined_call_operand.vmem [shape: f32[64,32], index: 0, kind: input, shape index: {}]
  %s1 = inlined_call_operand.vmem [shape: f32[64,32], index: 1, kind: input, shape index: {}]
  %s2 = inlined_call_operand.hbm [shape: f32[1,1], index: 2, kind: output, shape index: {}]
  %s3 = sld [smem:[#allocation0]]
  $region26: #{tpu_custom_call.1} parent=0
    _
  %s5 = ssub.s32 1, %s3
  %s6 = scalar_select 0, %s5, %s3
  $region1: #{tpu_custom_call.1} parent=0
    #allocation3 [shape = 'u8[512]{0}', space=smem, size = 0x200, scoped, tag = 'output window, operand 0, single buffered']
    #allocation4 [shape = 's32[1]{0}', space=sflag, size = 0x4, scoped, tag = 'scoped memory for tpu_custom_call.1']
    %7 = vsyncpa [#allocation4], 0
    // Predicated region
    $region2: #{tpu_custom_call.1} parent=1 // pred_check
      _
    $region3: #{tpu_custom_call.1} parent=1 // pred_check_branch
      %9 = sbr.rel (0) target = $region5
    $region4: #{tpu_custom_call.1} parent=1 // pred_region
      %s10 = sadd.s32 0, 0
      %s11 = smul.u32 8, %s10
      %p12 = scmp.lt.s32.totalorder %s11, 7
      %s13 = scalar_select %p12, %s11, 7
      %s14 = smul.addr %s13, 8
      %s15 = scalar_lea.vmem %s0, %s14
      %s16 = sadd.s32 0, 0
      %s17 = smul.u32 8, %s16
    $region5: #{tpu_custom_call.1} parent=1 // pred_fallthru
      _
    // Predicated region
    $region6: #{tpu_custom_call.1} parent=1 // pred_check
      _
    $region7: #{tpu_custom_call.1} parent=1 // pred_check_branch
      %19 = sbr.rel (0) target = $region9
    $region8: #{tpu_custom_call.1} parent=1 // pred_region
      %s20 = sadd.s32 0, 0
      %s21 = smul.u32 8, %s20
      %p22 = scmp.lt.s32.totalorder %s21, 7
      %s23 = scalar_select %p22, %s21, 7
      %s24 = smul.addr %s23, 8
      %s25 = scalar_lea.vmem %s1, %s24
      %s26 = sadd.s32 0, 0
      %s27 = smul.u32 8, %s26
    $region9: #{tpu_custom_call.1} parent=1 // pred_fallthru
      _
    %s28 = sadd.s32 0, 0
    %s29 = smul.u32 8, %s28
    %p30 = scmp.lt.s32.totalorder %s29, 7
    %s31 = scalar_select %p30, %s29, 7
    %s32 = smul.addr %s31, 8
    %s33 = scalar_lea.vmem %s0, %s32
    %s34 = sadd.s32 0, 0
    %s35 = smul.u32 8, %s34
    %p36 = scmp.lt.s32.totalorder %s35, 7
    %s37 = scalar_select %p36, %s35, 7
    %s38 = smul.addr %s37, 8
    %s39 = scalar_lea.vmem %s1, %s38
    %s40 = sadd.s32 0, 0
    %s41 = smul.u32 8, %s40
    %p42 = scmp.lt.s32.totalorder %s41, 7
    %s43 = scalar_select %p42, %s41, 7
    %s44 = smul.addr %s43, 8
    %s45 = scalar_lea.vmem %s0, %s44
    %s46 = sadd.s32 0, 0
    %s47 = smul.u32 8, %s46
    %s48 = sadd.s32 0, 0
    %s49 = smul.u32 8, %s48
    %p50 = scmp.lt.s32.totalorder %s49, 7
    %s51 = scalar_select %p50, %s49, 7
    %s52 = smul.addr %s51, 8
    %s53 = scalar_lea.vmem %s1, %s52
    %s54 = sadd.s32 0, 0
    %s55 = smul.u32 8, %s54
    %p56 = scmp.eq.s32.totalorder 0, 0
    // Predicated region
    $region10: #{tpu_custom_call.1} parent=1 // pred_check
      %p57 = pneg %p56
    $region11: #{tpu_custom_call.1} parent=1 // pred_check_branch
      %59 = sbr.rel (%p57) target = $region13
    $region12: #{tpu_custom_call.1} parent=1 // pred_region
      %vm60 = vcmask 261120
      %61 = vst.msk [vmem:[#allocation2] sm:$0xff] %vm60, 0.0
    $region13: #{tpu_custom_call.1} parent=1 // pred_fallthru
      _
    %v62 = vld [vmem:[%s45] sm:$0xff]
    %v63 = vld [vmem:[%s45 + $0x8] sm:$0xff]
    %v64 = vld [vmem:[%s45 + $0x10] sm:$0xff]
    %v65 = vld [vmem:[%s45 + $0x18] sm:$0xff]
    %v66 = vld [vmem:[%s45 + $0x20] sm:$0xff]
    %v67 = vld [vmem:[%s45 + $0x28] sm:$0xff]
    %v68 = vld [vmem:[%s45 + $0x30] sm:$0xff]
    %v69 = vld [vmem:[%s45 + $0x38] sm:$0xff]
    %v70 = vld [vmem:[%s53] sm:$0xff]
    %v71 = vld [vmem:[%s53 + $0x8] sm:$0xff]
    %v72 = vld [vmem:[%s53 + $0x10] sm:$0xff]
    %v73 = vld [vmem:[%s53 + $0x18] sm:$0xff]
    %v74 = vld [vmem:[%s53 + $0x20] sm:$0xff]
    %v75 = vld [vmem:[%s53 + $0x28] sm:$0xff]
    %v76 = vld [vmem:[%s53 + $0x30] sm:$0xff]
    %v77 = vld [vmem:[%s53 + $0x38] sm:$0xff]
    %v78 = vand.u32 2147483647, %v62
    %v79 = vand.u32 2147483647, %v63
    %v80 = vand.u32 2147483647, %v64
    %v81 = vand.u32 2147483647, %v65
    %v82 = vand.u32 2147483647, %v66
    %v83 = vand.u32 2147483647, %v67
    %v84 = vand.u32 2147483647, %v68
    %v85 = vand.u32 2147483647, %v69
    %v86 = vsub.f32 0.0, %v78
    %v87 = vsub.f32 0.0, %v79
    %v88 = vsub.f32 0.0, %v80
    %v89 = vsub.f32 0.0, %v81
    %v90 = vsub.f32 0.0, %v82
    %v91 = vsub.f32 0.0, %v83
    %v92 = vsub.f32 0.0, %v84
    %v93 = vsub.f32 0.0, %v85
    %v94 = vmul.f32 %v86, 1.442695
    %v95 = vpow.pop %v94
    %v96 = vmul.f32 %v87, 1.442695
    %v97 = vpow.pop %v96
    %v98 = vmul.f32 %v88, 1.442695
    %v99 = vpow.pop %v98
    %v100 = vmul.f32 %v89, 1.442695
    %v101 = vpow.pop %v100
    %v102 = vmul.f32 %v90, 1.442695
    %v103 = vpow.pop %v102
    %v104 = vmul.f32 %v91, 1.442695
    %v105 = vpow.pop %v104
    %v106 = vmul.f32 %v92, 1.442695
    %v107 = vpow.pop %v106
    %v108 = vmul.f32 %v93, 1.442695
    %v109 = vpow.pop %v108
    %vm110 = vcmp.ge.f32.partialorder %v62, 0.0
    %vm111 = vcmp.ge.f32.partialorder %v63, 0.0
    %vm112 = vcmp.ge.f32.partialorder %v64, 0.0
    %vm113 = vcmp.ge.f32.partialorder %v65, 0.0
    %vm114 = vcmp.ge.f32.partialorder %v66, 0.0
    %vm115 = vcmp.ge.f32.partialorder %v67, 0.0
    %vm116 = vcmp.ge.f32.partialorder %v68, 0.0
    %vm117 = vcmp.ge.f32.partialorder %v69, 0.0
    %v118 = vsel %vm110, 1.0, %v95
    %v119 = vsel %vm111, 1.0, %v97
    %v120 = vsel %vm112, 1.0, %v99
    %v121 = vsel %vm113, 1.0, %v101
    %v122 = vsel %vm114, 1.0, %v103
    %v123 = vsel %vm115, 1.0, %v105
    %v124 = vsel %vm116, 1.0, %v107
    %v125 = vsel %vm117, 1.0, %v109
    %v126 = vadd.f32 %v95, 1.0
    %v127 = vadd.f32 %v97, 1.0
    %v128 = vadd.f32 %v99, 1.0
    %v129 = vadd.f32 %v101, 1.0
    %v130 = vadd.f32 %v103, 1.0
    %v131 = vadd.f32 %v105, 1.0
    %v132 = vadd.f32 %v107, 1.0
    %v133 = vadd.f32 %v109, 1.0
    %v134 = vrcp.pop %v126
    %v135 = vmul.f32 %v118, %v134
    %v136 = vrcp.pop %v127
    %v137 = vmul.f32 %v119, %v136
    %v138 = vrcp.pop %v128
    %v139 = vmul.f32 %v120, %v138
    %v140 = vrcp.pop %v129
    %v141 = vmul.f32 %v121, %v140
    %v142 = vrcp.pop %v130
    %v143 = vmul.f32 %v122, %v142
    %v144 = vrcp.pop %v131
    %v145 = vmul.f32 %v123, %v144
    %v146 = vrcp.pop %v132
    %v147 = vmul.f32 %v124, %v146
    %v148 = vrcp.pop %v133
    %v149 = vmul.f32 %v125, %v148
    %v150 = vsub.f32 %v135, %v70
    %v151 = vsub.f32 %v137, %v71
    %v152 = vsub.f32 %v139, %v72
    %v153 = vsub.f32 %v141, %v73
    %v154 = vsub.f32 %v143, %v74
    %v155 = vsub.f32 %v145, %v75
    %v156 = vsub.f32 %v147, %v76
    %v157 = vsub.f32 %v149, %v77
    %v158 = vand.u32 2147483647, %v150
    %v159 = vand.u32 2147483647, %v151
    %v160 = vand.u32 2147483647, %v152
    %v161 = vand.u32 2147483647, %v153
    %v162 = vand.u32 2147483647, %v154
    %v163 = vand.u32 2147483647, %v155
    %v164 = vand.u32 2147483647, %v156
    %v165 = vand.u32 2147483647, %v157
    %v166 = vmul.f32 %v158, 1.5
    %v167 = vmul.f32 %v159, 1.5
    %v168 = vmul.f32 %v160, 1.5
    %v169 = vmul.f32 %v161, 1.5
    %v170 = vmul.f32 %v162, 1.5
    %v171 = vmul.f32 %v163, 1.5
    %v172 = vmul.f32 %v164, 1.5
    %v173 = vmul.f32 %v165, 1.5
    %v174 = vmul.f32 %v70, 0.75
    %v175 = vmul.f32 %v71, 0.75
    %v176 = vmul.f32 %v72, 0.75
    %v177 = vmul.f32 %v73, 0.75
    %v178 = vmul.f32 %v74, 0.75
    %v179 = vmul.f32 %v75, 0.75
    %v180 = vmul.f32 %v76, 0.75
    %v181 = vmul.f32 %v77, 0.75
    %vm182 = vcmp.gt.f32.partialorder %v70, 0.0
    %vm183 = vcmp.gt.f32.partialorder %v71, 0.0
    %vm184 = vcmp.gt.f32.partialorder %v72, 0.0
    %vm185 = vcmp.gt.f32.partialorder %v73, 0.0
    %vm186 = vcmp.gt.f32.partialorder %v74, 0.0
    %vm187 = vcmp.gt.f32.partialorder %v75, 0.0
    %vm188 = vcmp.gt.f32.partialorder %v76, 0.0
    %vm189 = vcmp.gt.f32.partialorder %v77, 0.0
    %v190 = vsel %vm182, %v174, %v166
    %v191 = vsel %vm183, %v175, %v167
    %v192 = vsel %vm184, %v176, %v168
    %v193 = vsel %vm185, %v177, %v169
    %v194 = vsel %vm186, %v178, %v170
    %v195 = vsel %vm187, %v179, %v171
    %v196 = vsel %vm188, %v180, %v172
    %v197 = vsel %vm189, %v181, %v173
    %v198 = vmax.f32 %v62, 0.0
    %v199 = vmax.f32 %v63, 0.0
    %v200 = vmax.f32 %v64, 0.0
    %v201 = vmax.f32 %v65, 0.0
    %v202 = vmax.f32 %v66, 0.0
    %v203 = vmax.f32 %v67, 0.0
    %v204 = vmax.f32 %v68, 0.0
    %v205 = vmax.f32 %v69, 0.0
    %v206 = vmul.f32 %v62, %v70
    %v207 = vmul.f32 %v63, %v71
    %v208 = vmul.f32 %v64, %v72
    %v209 = vmul.f32 %v65, %v73
    %v210 = vmul.f32 %v66, %v74
    %v211 = vmul.f32 %v67, %v75
    %v212 = vmul.f32 %v68, %v76
    %v213 = vmul.f32 %v69, %v77
    %v214 = vsub.f32 %v198, %v206
    %v215 = vsub.f32 %v199, %v207
    %v216 = vsub.f32 %v200, %v208
    %v217 = vsub.f32 %v201, %v209
    %v218 = vsub.f32 %v202, %v210
    %v219 = vsub.f32 %v203, %v211
    %v220 = vsub.f32 %v204, %v212
    %v221 = vsub.f32 %v205, %v213
    %v222 = vadd.f32 %v95, 1.0
    %v223 = vlog2.pop %v222
    %v224 = vmul.f32 %v223, 0.6931472
    %v225 = vmul.f32 -0.5, %v95
    %v226 = vadd.f32 %v225, 1.0
    %v227 = vmul.f32 %v226, %v95
    %v228 = vand.u32 2147483647, %v95
    %vm229 = vcmp.lt.f32.partialorder %v228, 0.0004427343
    %v230 = vsel %vm229, %v227, %v224
    %v231 = vadd.f32 %v97, 1.0
    %v232 = vlog2.pop %v231
    %v233 = vmul.f32 %v232, 0.6931472
    %v234 = vmul.f32 -0.5, %v97
    %v235 = vadd.f32 %v234, 1.0
    %v236 = vmul.f32 %v235, %v97
    %v237 = vand.u32 2147483647, %v97
    %vm238 = vcmp.lt.f32.partialorder %v237, 0.0004427343
    %v239 = vsel %vm238, %v236, %v233
    %v240 = vadd.f32 %v99, 1.0
    %v241 = vlog2.pop %v240
    %v242 = vmul.f32 %v241, 0.6931472
    %v243 = vmul.f32 -0.5, %v99
    %v244 = vadd.f32 %v243, 1.0
    %v245 = vmul.f32 %v244, %v99
    %v246 = vand.u32 2147483647, %v99
    %vm247 = vcmp.lt.f32.partialorder %v246, 0.0004427343
    %v248 = vsel %vm247, %v245, %v242
    %v249 = vadd.f32 %v101, 1.0
    %v250 = vlog2.pop %v249
    %v251 = vmul.f32 %v250, 0.6931472
    %v252 = vmul.f32 -0.5, %v101
    %v253 = vadd.f32 %v252, 1.0
    %v254 = vmul.f32 %v253, %v101
    %v255 = vand.u32 2147483647, %v101
    %vm256 = vcmp.lt.f32.partialorder %v255, 0.0004427343
    %v257 = vsel %vm256, %v254, %v251
    %v258 = vadd.f32 %v103, 1.0
    %v259 = vlog2.pop %v258
    %v260 = vmul.f32 %v259, 0.6931472
    %v261 = vmul.f32 -0.5, %v103
    %v262 = vadd.f32 %v261, 1.0
    %v263 = vmul.f32 %v262, %v103
    %v264 = vand.u32 2147483647, %v103
    %vm265 = vcmp.lt.f32.partialorder %v264, 0.0004427343
    %v266 = vsel %vm265, %v263, %v260
    %v267 = vadd.f32 %v105, 1.0
    %v268 = vlog2.pop %v267
    %v269 = vmul.f32 %v268, 0.6931472
    %v270 = vmul.f32 -0.5, %v105
    %v271 = vadd.f32 %v270, 1.0
    %v272 = vmul.f32 %v271, %v105
    %v273 = vand.u32 2147483647, %v105
    %vm274 = vcmp.lt.f32.partialorder %v273, 0.0004427343
    %v275 = vsel %vm274, %v272, %v269
    %v276 = vadd.f32 %v107, 1.0
    %v277 = vlog2.pop %v276
    %v278 = vmul.f32 %v277, 0.6931472
    %v279 = vmul.f32 -0.5, %v107
    %v280 = vadd.f32 %v279, 1.0
    %v281 = vmul.f32 %v280, %v107
    %v282 = vand.u32 2147483647, %v107
    %vm283 = vcmp.lt.f32.partialorder %v282, 0.0004427343
    %v284 = vsel %vm283, %v281, %v278
    %v285 = vadd.f32 %v109, 1.0
    %v286 = vlog2.pop %v285
    %v287 = vmul.f32 %v286, 0.6931472
    %v288 = vmul.f32 -0.5, %v109
    %v289 = vadd.f32 %v288, 1.0
    %v290 = vmul.f32 %v289, %v109
    %v291 = vand.u32 2147483647, %v109
    %vm292 = vcmp.lt.f32.partialorder %v291, 0.0004427343
    %v293 = vsel %vm292, %v290, %v287
    %v294 = vadd.f32 %v214, %v230
    %v295 = vadd.f32 %v215, %v239
    %v296 = vadd.f32 %v216, %v248
    %v297 = vadd.f32 %v217, %v257
    %v298 = vadd.f32 %v218, %v266
    %v299 = vadd.f32 %v219, %v275
    %v300 = vadd.f32 %v220, %v284
    %v301 = vadd.f32 %v221, %v293
    %v302 = vmul.f32 %v294, %v190
    %v303 = vmul.f32 %v295, %v191
    %v304 = vmul.f32 %v296, %v192
    %v305 = vmul.f32 %v297, %v193
    %v306 = vmul.f32 %v298, %v194
    %v307 = vmul.f32 %v299, %v195
    %v308 = vmul.f32 %v300, %v196
    %v309 = vmul.f32 %v301, %v197
    %v310 = vld [vmem:[#allocation2] sm:$0xff]
    %vm311 = vcmask 261120
    %v312 = vsel %vm311, %v302, 0.0
    %v313 = vsel %vm311, %v303, 0.0
    %v314 = vadd.f32 %v312, %v313
    %v315 = vsel %vm311, %v304, 0.0
    %v316 = vadd.f32 %v314, %v315
    %v317 = vsel %vm311, %v305, 0.0
    %v318 = vadd.f32 %v316, %v317
    %v319 = vsel %vm311, %v306, 0.0
    %v320 = vadd.f32 %v318, %v319
    %v321 = vsel %vm311, %v307, 0.0
    %v322 = vadd.f32 %v320, %v321
    %v323 = vsel %vm311, %v308, 0.0
    %v324 = vadd.f32 %v322, %v323
    %v325 = vsel %vm311, %v309, 0.0
    %v326 = vadd.f32 %v324, %v325
    %v327 = vadd.f32 %v310, %v326
    %328 = vst.msk [vmem:[#allocation2] sm:$0xff] %vm311, %v327
    // Predicated region
    $region14: #{tpu_custom_call.1} parent=1 // pred_check
      %p329 = pneg %p56
    $region15: #{tpu_custom_call.1} parent=1 // pred_check_branch
      %331 = sbr.rel (%p329) target = $region17
    $region16: #{tpu_custom_call.1} parent=1 // pred_region
      %v332 = vld [vmem:[#allocation2] sm:$0xff]
      %v333 = vsel %vm311, %v332, 0.0
      %334 = vadd.xlane.f32.xlu0 %v333
      %v335 = vpop.xlane.xlu0 %334
      %v336 = vrot.slane %v335, 4
      %v337 = vadd.f32 %v335, %v336
      %v338 = vrot.slane %v337, 2
      %v339 = vadd.f32 %v337, %v338
      %v340 = vrot.slane %v339, 1
      %v341 = vadd.f32 %v339, %v340
      %s342 = vtos %v341
      %s343 = scalar_lea.smem [#allocation3], 0
      %344 = sst [smem:[%s343]] %s342
    $region17: #{tpu_custom_call.1} parent=1 // pred_fallthru
      _
    // Predicated region
    $region18: #{tpu_custom_call.1} parent=1 // pred_check
      _
    $region19: #{tpu_custom_call.1} parent=1 // pred_check_branch
      %346 = sbr.rel (0) target = $region21
    $region20: #{tpu_custom_call.1} parent=1 // pred_region
      %s348 = ssub.s32 16, 16
      %349 = vsyncadd [#allocation4], %s348
      %352 = dma.smem_to_hbm [#allocation3], 16, %s2, [#allocation4]
    $region21: #{tpu_custom_call.1} parent=1 // pred_fallthru
      _
    // Predicated region
    $region22: #{tpu_custom_call.1} parent=1 // pred_check
      _
    $region23: #{tpu_custom_call.1} parent=1 // pred_check_branch
      %354 = sbr.rel (0) target = $region25
    $region24: #{tpu_custom_call.1} parent=1 // pred_region
      %355 = dma.done [#allocation4], 16
    $region25: #{tpu_custom_call.1} parent=1 // pred_fallthru
      _
    %356 = sfence
    %357 = vsyncpa [#allocation4], 1

</llo_original>
